<compile_context>
chip_gen: v7x
topology: tpu7x:2x2x1
jax: 0.10.0
libtpu: 0.0.40
codegen_flags: <defaults>
</compile_context>

<pallas_src>
import math

import jax
import jax.numpy as jnp
from jax.experimental import pallas as pl
from jax.experimental.pallas import tpu as pltpu

_MIB = 1024 * 1024


def _round_up(x, m):
    return (x + m - 1) // m * m


def _vmem_budget_bytes():
    """Generation-aware (budget_for_tile_picker, vmem_limit_bytes)."""
    try:
        cap = int(pltpu.get_tpu_info().vmem_capacity_bytes)
    except Exception:  # info query unavailable -> assume the larger (v5e/v6e) VMEM
        cap = 128 * _MIB
    if cap <= 64 * _MIB:          # v7x: 64 MiB physical per TensorCore
        limit = 48 * _MIB
    else:                         # v5e / v6e: 128 MiB physical
        limit = 64 * _MIB
    budget = (limit * 3) // 4     # headroom for compiler-internal scratch
    return budget, limit


def _pick_tile_n(n, d, p, x_itemsize, out_itemsize, budget_bytes):
    """Largest TN (multiple of 16, <= 2048) whose working set fits the VMEM budget.

    Once n >= 32 the tile is clamped to at most half the (16-rounded) row count
    so the grid always has >= 2 steps and the 'parallel' N axis can be sharded
    across v7x's two TensorCores.
    """
    np16 = _round_up(n, 16)
    cap = min(2048, np16)
    if np16 >= 32:
        cap = min(cap, max(16, (np16 // 2) // 16 * 16))

    candidates = [t for t in (2048, 1024, 512, 256, 128, 64, 32, 16) if t <= cap]
    if cap not in candidates:
        candidates.insert(0, cap)

    # Conservative (double-buffered) estimate for the grid-invariant operands,
    # even though we request single buffering for them.
    weights = 2 * (2 * d * p * x_itemsize + p * 4)
    for tn in candidates:
        need = (2 * tn * d * x_itemsize          # double-buffered x tile
                + 2 * tn * p * out_itemsize      # double-buffered output slab
                + 2 * tn * p * 4                 # f32 intermediates (md, v)
                + weights)
        if need <= budget_bytes:
            return tn
    return 16


def _fused_kernel(x_ref, wmd_ref, wsig_ref, b_ref, out_ref):
    xb = x_ref[...]                                                  # (TN, D) bf16
    # Two lane-dense (128-padded) MXU passes, f32 accumulation.
    md = jnp.dot(xb, wmd_ref[...],
                 preferred_element_type=jnp.float32)                 # scale*m | deltas | 0
    v = jnp.dot(xb * xb, wsig_ref[...],
                preferred_element_type=jnp.float32)                  # (pi/8)*v | 0     | 0
    # w_sig is exactly zero in the delta / padded columns -> v == 0 there ->
    # rsqrt(1 + v) == 1, so this single fused expression yields
    #   scale*k*m + b_cls   in the score columns,
    #   x@W_bbox^T + b_bbox in the delta columns,
    #   0                   in the padded columns.
    out_ref[...] = (jax.lax.rsqrt(1.0 + v) * md + b_ref[...]).astype(out_ref.dtype)


def prepare_params(w_cls, b_cls, w_sigma, w_bbox, b_bbox, scale,
                   compute_dtype=jnp.bfloat16, out_dtype=jnp.float32):
    """One-time weight preparation (model setup, NOT per forward call).

    Folds `scale` into the W_cls columns and `pi/8` into the softplus(W_sigma)
    columns (in f32, before the bf16 cast), pre-transposes everything to
    (D, out) and packs cls|bbox into one lane-dense, 128-padded RHS.
    """
    c1, d = w_cls.shape
    r = w_bbox.shape[0]
    p = _round_up(c1 + r, 128)

    var = (math.pi / 8.0) * jax.nn.softplus(w_sigma.astype(jnp.float32))   # (C1, D)

    w_md = jnp.zeros((d, p), jnp.float32)
    w_md = w_md.at[:, 0:c1].set(float(scale) * w_cls.astype(jnp.float32).T)
    w_md = w_md.at[:, c1:c1 + r].set(w_bbox.astype(jnp.float32).T)

    w_sig = jnp.zeros((d, p), jnp.float32)       # MUST stay exactly 0 for cols >= c1
    w_sig = w_sig.at[:, 0:c1].set(var.T)

    b_comb = jnp.zeros((1, p), jnp.float32)
    b_comb = b_comb.at[0, 0:c1].set(b_cls.astype(jnp.float32))
    b_comb = b_comb.at[0, c1:c1 + r].set(b_bbox.astype(jnp.float32))

    return dict(
        w_md=w_md.astype(compute_dtype),
        w_sig=w_sig.astype(compute_dtype),
        b_comb=b_comb,
        c1=c1, r=r, d=d, p=p,
        scale=float(scale),
        compute_dtype=compute_dtype,
        out_dtype=out_dtype,
    )


def bayesian_output_layers(x, params):
    """x: (N, D) (or (N, ...) flattened); params from prepare_params()."""
    if x.ndim > 2:
        x = x.reshape(x.shape[0], -1)                          # torch.flatten(x, 1)
    n, d = x.shape
    c1, r, p = params["c1"], params["r"], params["p"]
    assert d == params["d"], "feature dim mismatch with prepared weights"
    cdt = params["compute_dtype"]
    odt = params["out_dtype"]
    x_itemsize = jnp.dtype(cdt).itemsize
    out_itemsize = jnp.dtype(odt).itemsize

    budget, vmem_limit = _vmem_budget_bytes()
    tn = _pick_tile_n(n, d, p, x_itemsize, out_itemsize, budget)
    n_pad = _round_up(n, tn)

    xb = x.astype(cdt)
    if n_pad != n:
        xb = jnp.pad(xb, ((0, n_pad - n), (0, 0)))

    flops = 2 * 2 * n_pad * d * p                              # two (n_pad,d)x(d,p) matmuls
    bytes_accessed = (n_pad * d * x_itemsize                   # x
                      + 2 * d * p * x_itemsize                 # packed weights
                      + p * 4                                  # bias row
                      + n_pad * p * out_itemsize)              # output slab

    def _call(single_buffer_weights):
        wkw = {}
        if single_buffer_weights and hasattr(pl, "Buffered"):
            # Constant index_map -> fetched once; single buffer reclaims VMEM.
            wkw = dict(pipeline_mode=pl.Buffered(1))
        return pl.pallas_call(
            _fused_kernel,
            out_shape=jax.ShapeDtypeStruct((n_pad, p), odt),
            grid=(n_pad // tn,),
            in_specs=[
                pl.BlockSpec((tn, d), lambda i: (i, 0)),               # x tile
                pl.BlockSpec((d, p), lambda i: (0, 0), **wkw),         # scale*cls | bbox
                pl.BlockSpec((d, p), lambda i: (0, 0), **wkw),         # (pi/8)*softplus(sigma)
                pl.BlockSpec((1, p), lambda i: (0, 0), **wkw),         # packed bias row
            ],
            out_specs=pl.BlockSpec((tn, p), lambda i: (i, 0)),         # lane-dense output slab
            compiler_params=pltpu.CompilerParams(
                dimension_semantics=("parallel",),
                vmem_limit_bytes=vmem_limit,
            ),
            cost_estimate=pl.CostEstimate(
                flops=int(flops),
                transcendentals=int(n_pad * p),
                bytes_accessed=int(bytes_accessed),
            ),
        )(xb, params["w_md"], params["w_sig"], params["b_comb"])

    try:
        out = _call(True)
    except Exception:
        # Fallback if single-buffered constant operands (pipeline_mode) are not
        # supported by this JAX/Mosaic version.
        out = _call(False)

    scores = out[:n, 0:c1]
    deltas = out[:n, c1:c1 + r]
    return scores, deltas


def _reference_f32(x, w_cls, b_cls, w_sigma, w_bbox, b_bbox, scale):
    """Direct port of the PyTorch forward (full f32)."""
    if x.ndim > 2:
        x = x.reshape(x.shape[0], -1)
    var = jax.nn.softplus(w_sigma)[None, :, :]                 # (1, C+1, D)
    weight = w_cls[None, :, :]                                 # (1, C+1, D)
    x_ = x[:, None, :]                                         # (N, 1, D)
    m = (x_ * weight).sum(-1)
    v = (x_ * x_ * var).sum(-1)
    k = (1.0 + math.pi * v / 8.0) ** (-0.5)
    scores = scale * k * m + b_cls[None, :]
    deltas = x @ w_bbox.T + b_bbox[None, :]
    return scores, deltas


def _reference_bf16(x, w_cls, b_cls, w_sigma, w_bbox, b_bbox, scale):
    """Reference replicating the kernel's folded-constant bf16 matmul inputs."""
    if x.ndim > 2:
        x = x.reshape(x.shape[0], -1)
    xb = x.astype(jnp.bfloat16)
    x2b = xb * xb
    wcb = (float(scale) * w_cls.astype(jnp.float32)).astype(jnp.bfloat16)        # scale folded
    varb = ((math.pi / 8.0) *
            jax.nn.softplus(w_sigma.astype(jnp.float32))).astype(jnp.bfloat16)   # pi/8 folded
    wbb = w_bbox.astype(jnp.bfloat16)
    sm = jnp.dot(xb, wcb.T, preferred_element_type=jnp.float32)   # scale * m
    v = jnp.dot(x2b, varb.T, preferred_element_type=jnp.float32)  # (pi/8) * v
    k = jax.lax.rsqrt(1.0 + v)
    scores = k * sm + b_cls[None, :]
    deltas = jnp.dot(xb, wbb.T, preferred_element_type=jnp.float32) + b_bbox[None, :]
    return scores, deltas


if __name__ == "__main__":
    key = jax.random.PRNGKey(0)
    k_x, k_wc, k_wb, k_bc, k_bb = jax.random.split(key, 5)

    # Small config consistent with the module:
    #   input_size D = 128, num_classes = 15 (-> C+1 = 16 scores),
    #   cls_agnostic_bbox_reg = False, box_dim = 4 -> R = 60 bbox outputs,
    #   N = 16 proposals, COSINE_SCALE = 20.0, cosine_novel_only = False.
    N, D, NUM_CLASSES, BOX_DIM = 16, 128, 15, 4
    C1 = NUM_CLASSES + 1
    R = NUM_CLASSES * BOX_DIM
    SCALE = 20.0

    x = jax.random.normal(k_x, (N, D), dtype=jnp.float32)

    w_cls = 0.01 * jax.random.normal(k_wc, (C1, D), dtype=jnp.float32)    # std=0.01
    w_sigma = jnp.full((C1, D), math.log(math.e - 1.0), dtype=jnp.float32)
    w_bbox = 0.001 * jax.random.normal(k_wb, (R, D), dtype=jnp.float32)   # std=0.001
    # Non-zero biases so the bias path is actually exercised by the check.
    b_cls = 0.1 * jax.random.normal(k_bc, (C1,), dtype=jnp.float32)
    b_bbox = 0.05 * jax.random.normal(k_bb, (R,), dtype=jnp.float32)

    # One-time prep (softplus + constant folding + transpose + packing + bf16 cast).
    params = prepare_params(w_cls, b_cls, w_sigma, w_bbox, b_bbox, SCALE)

    scores, deltas = bayesian_output_layers(x, params)
    jax.block_until_ready((scores, deltas))

    rs_bf, rd_bf = _reference_bf16(x, w_cls, b_cls, w_sigma, w_bbox, b_bbox, SCALE)
    rs_32, rd_32 = _reference_f32(x, w_cls, b_cls, w_sigma, w_bbox, b_bbox, SCALE)

    assert scores.shape == (N, C1) and deltas.shape == (N, R)
    # Tight check vs a reference using the same folded bf16 matmul inputs.
    assert jnp.allclose(scores, rs_bf, atol=5e-3, rtol=5e-3)
    assert jnp.allclose(deltas, rd_bf, atol=5e-3, rtol=5e-3)
    # Looser check vs the pure-f32 PyTorch-equivalent reference (bf16 MXU error).
    assert jnp.allclose(scores, rs_32, atol=5e-2, rtol=5e-2)
    assert jnp.allclose(deltas, rd_32, atol=5e-2, rtol=5e-2)

    # Optional bf16-output path (halves HBM writeback; looser tolerance on deltas).
    params_bf16 = prepare_params(w_cls, b_cls, w_sigma, w_bbox, b_bbox, SCALE,
                                 out_dtype=jnp.bfloat16)
    s16, d16 = bayesian_output_layers(x, params_bf16)
    jax.block_until_ready((s16, d16))
    assert s16.dtype == jnp.bfloat16 and d16.dtype == jnp.bfloat16
    assert jnp.allclose(s16.astype(jnp.float32), rs_32, atol=1e-1, rtol=1e-1)
    assert jnp.allclose(d16.astype(jnp.float32), rd_32, atol=1e-1, rtol=1e-1)

    print("KERNEL_OK")
</pallas_src>

<mosaic_0001>
module attributes {stable_mosaic.version = 11 : i64} {
  func.func @_fused_kernel(%arg0: i32, %arg1: memref<16x128xbf16, #tpu.memory_space<vmem>>, %arg2: memref<128x128xbf16, #tpu.memory_space<vmem>>, %arg3: memref<128x128xbf16, #tpu.memory_space<vmem>>, %arg4: memref<1x128xf32, #tpu.memory_space<vmem>>, %arg5: memref<16x128xf32, #tpu.memory_space<vmem>>) attributes {dimension_semantics = [#tpu.dimension_semantics<parallel>], iteration_bounds = array<i64: 1>, scalar_prefetch = 0 : i64, scratch_operands = 0 : i64, tpu.core_type = #tpu.core_type<tc>, window_params = [{transform_indices = @transform_0, window_bounds = array<i64: 16, 128>}, {pipeline_mode = #tpu.pipeline_mode<synchronous>, transform_indices = @transform_1, window_bounds = array<i64: 128, 128>}, {pipeline_mode = #tpu.pipeline_mode<synchronous>, transform_indices = @transform_2, window_bounds = array<i64: 128, 128>}, {pipeline_mode = #tpu.pipeline_mode<synchronous>, transform_indices = @transform_3, window_bounds = array<i64: 1, 128>}, {transform_indices = @transform_4, window_bounds = array<i64: 16, 128>}]} {
    %c0 = arith.constant 0 : index
    %c0_0 = arith.constant 0 : index
    %0 = vector.load %arg1[%c0, %c0_0] : memref<16x128xbf16, #tpu.memory_space<vmem>>, vector<16x128xbf16>
    %c0_1 = arith.constant 0 : index
    %c0_2 = arith.constant 0 : index
    %1 = vector.load %arg2[%c0_1, %c0_2] : memref<128x128xbf16, #tpu.memory_space<vmem>>, vector<128x128xbf16>
    %cst = arith.constant dense<0.000000e+00> : vector<16x128xf32>
    %2 = tpu.matmul %0, %1, %cst {dimension_numbers = #tpu.dot_dimension_numbers<[1], [0], [0], [1], [0, 0, 1, 1], [], []>} : vector<16x128xbf16>, vector<128x128xbf16>, vector<16x128xf32> -> vector<16x128xf32>
    %3 = arith.mulf %0, %0 : vector<16x128xbf16>
    %c0_3 = arith.constant 0 : index
    %c0_4 = arith.constant 0 : index
    %4 = vector.load %arg3[%c0_3, %c0_4] : memref<128x128xbf16, #tpu.memory_space<vmem>>, vector<128x128xbf16>
    %cst_5 = arith.constant dense<0.000000e+00> : vector<16x128xf32>
    %5 = tpu.matmul %3, %4, %cst_5 {dimension_numbers = #tpu.dot_dimension_numbers<[1], [0], [0], [1], [0, 0, 1, 1], [], []>} : vector<16x128xbf16>, vector<128x128xbf16>, vector<16x128xf32> -> vector<16x128xf32>
    %cst_6 = arith.constant 1.000000e+00 : f32
    %6 = vector.broadcast %cst_6 : f32 to vector<16x128xf32>
    %7 = arith.addf %6, %5 : vector<16x128xf32>
    %8 = math.rsqrt %7 : vector<16x128xf32>
    %9 = arith.mulf %8, %2 : vector<16x128xf32>
    %c0_7 = arith.constant 0 : index
    %c0_8 = arith.constant 0 : index
    %10 = vector.load %arg4[%c0_7, %c0_8] : memref<1x128xf32, #tpu.memory_space<vmem>>, vector<1x128xf32>
    %11 = vector.broadcast %10 : vector<1x128xf32> to vector<16x128xf32>
    %12 = arith.addf %9, %11 : vector<16x128xf32>
    %c0_9 = arith.constant 0 : index
    %c0_10 = arith.constant 0 : index
    %13 = vector.load %arg5[%c0_9, %c0_10] : memref<16x128xf32, #tpu.memory_space<vmem>>, vector<16x128xf32>
    tpu.vector_store %arg5[%c0_9, %c0_10], %12 {strides = array<i32>} : memref<16x128xf32, #tpu.memory_space<vmem>>, vector<16x128xf32>,
    return
  }
  func.func @transform_0(%arg0: i32) -> (i32, i32) {
    %c0_i32 = arith.constant 0 : i32
    %c0_i32_0 = arith.constant 0 : i32
    return %arg0, %c0_i32 : i32, i32
  }
  func.func @transform_1(%arg0: i32) -> (i32, i32) {
    %c0_i32 = arith.constant 0 : i32
    %c0_i32_0 = arith.constant 0 : i32
    %c0_i32_1 = arith.constant 0 : i32
    return %c0_i32, %c0_i32_0 : i32, i32
  }
  func.func @transform_2(%arg0: i32) -> (i32, i32) {
    %c0_i32 = arith.constant 0 : i32
    %c0_i32_0 = arith.constant 0 : i32
    %c0_i32_1 = arith.constant 0 : i32
    return %c0_i32, %c0_i32_0 : i32, i32
  }
  func.func @transform_3(%arg0: i32) -> (i32, i32) {
    %c0_i32 = arith.constant 0 : i32
    %c0_i32_0 = arith.constant 0 : i32
    %c0_i32_1 = arith.constant 0 : i32
    return %c0_i32, %c0_i32_0 : i32, i32
  }
  func.func @transform_4(%arg0: i32) -> (i32, i32) {
    %c0_i32 = arith.constant 0 : i32
    %c0_i32_0 = arith.constant 0 : i32
    return %arg0, %c0_i32 : i32, i32
  }
}

module attributes {stable_mosaic.version = 11 : i64} {
  func.func @_fused_kernel(%arg0: i32, %arg1: memref<16x128xbf16, #tpu.memory_space<vmem>>, %arg2: memref<128x128xbf16, #tpu.memory_space<vmem>>, %arg3: memref<128x128xbf16, #tpu.memory_space<vmem>>, %arg4: memref<1x128xf32, #tpu.memory_space<vmem>>, %arg5: memref<16x128xf32, #tpu.memory_space<vmem>>) attributes {dimension_semantics = [#tpu.dimension_semantics<parallel>], iteration_bounds = array<i64: 1>, scalar_prefetch = 0 : i64, scratch_operands = 0 : i64, tpu.core_type = #tpu.core_type<tc>, window_params = [{transform_indices = @transform_0, window_bounds = array<i64: 16, 128>}, {pipeline_mode = #tpu.pipeline_mode<synchronous>, transform_indices = @transform_1, window_bounds = array<i64: 128, 128>}, {pipeline_mode = #tpu.pipeline_mode<synchronous>, transform_indices = @transform_2, window_bounds = array<i64: 128, 128>}, {pipeline_mode = #tpu.pipeline_mode<synchronous>, transform_indices = @transform_3, window_bounds = array<i64: 1, 128>}, {transform_indices = @transform_4, window_bounds = array<i64: 16, 128>}]} {
    %c0 = arith.constant 0 : index
    %c0_0 = arith.constant 0 : index
    %0 = vector.load %arg1[%c0, %c0_0] : memref<16x128xbf16, #tpu.memory_space<vmem>>, vector<16x128xbf16>
    %c0_1 = arith.constant 0 : index
    %c0_2 = arith.constant 0 : index
    %1 = vector.load %arg2[%c0_1, %c0_2] : memref<128x128xbf16, #tpu.memory_space<vmem>>, vector<128x128xbf16>
    %cst = arith.constant dense<0.000000e+00> : vector<16x128xf32>
    %2 = tpu.matmul %0, %1, %cst {dimension_numbers = #tpu.dot_dimension_numbers<[1], [0], [0], [1], [0, 0, 1, 1], [], []>} : vector<16x128xbf16>, vector<128x128xbf16>, vector<16x128xf32> -> vector<16x128xf32>
    %3 = arith.mulf %0, %0 : vector<16x128xbf16>
    %c0_3 = arith.constant 0 : index
    %c0_4 = arith.constant 0 : index
    %4 = vector.load %arg3[%c0_3, %c0_4] : memref<128x128xbf16, #tpu.memory_space<vmem>>, vector<128x128xbf16>
    %cst_5 = arith.constant dense<0.000000e+00> : vector<16x128xf32>
    %5 = tpu.matmul %3, %4, %cst_5 {dimension_numbers = #tpu.dot_dimension_numbers<[1], [0], [0], [1], [0, 0, 1, 1], [], []>} : vector<16x128xbf16>, vector<128x128xbf16>, vector<16x128xf32> -> vector<16x128xf32>
    %cst_6 = arith.constant 1.000000e+00 : f32
    %6 = vector.broadcast %cst_6 : f32 to vector<16x128xf32>
    %7 = arith.addf %6, %5 : vector<16x128xf32>
    %8 = math.rsqrt %7 : vector<16x128xf32>
    %9 = arith.mulf %8, %2 : vector<16x128xf32>
    %c0_7 = arith.constant 0 : index
    %c0_8 = arith.constant 0 : index
    %10 = vector.load %arg4[%c0_7, %c0_8] : memref<1x128xf32, #tpu.memory_space<vmem>>, vector<1x128xf32>
    %11 = vector.broadcast %10 : vector<1x128xf32> to vector<16x128xf32>
    %12 = arith.addf %9, %11 : vector<16x128xf32>
    %c0_9 = arith.constant 0 : index
    %c0_10 = arith.constant 0 : index
    %13 = vector.load %arg5[%c0_9, %c0_10] : memref<16x128xf32, #tpu.memory_space<vmem>>, vector<16x128xf32>
    tpu.vector_store %arg5[%c0_9, %c0_10], %12 {strides = array<i32>} : memref<16x128xf32, #tpu.memory_space<vmem>>, vector<16x128xf32>,
    return
  }
  func.func @transform_0(%arg0: i32) -> (i32, i32) {
    %c0_i32 = arith.constant 0 : i32
    %c0_i32_0 = arith.constant 0 : i32
    return %arg0, %c0_i32 : i32, i32
  }
  func.func @transform_1(%arg0: i32) -> (i32, i32) {
    %c0_i32 = arith.constant 0 : i32
    %c0_i32_0 = arith.constant 0 : i32
    %c0_i32_1 = arith.constant 0 : i32
    return %c0_i32, %c0_i32_0 : i32, i32
  }
  func.func @transform_2(%arg0: i32) -> (i32, i32) {
    %c0_i32 = arith.constant 0 : i32
    %c0_i32_0 = arith.constant 0 : i32
    %c0_i32_1 = arith.constant 0 : i32
    return %c0_i32, %c0_i32_0 : i32, i32
  }
  func.func @transform_3(%arg0: i32) -> (i32, i32) {
    %c0_i32 = arith.constant 0 : i32
    %c0_i32_0 = arith.constant 0 : i32
    %c0_i32_1 = arith.constant 0 : i32
    return %c0_i32, %c0_i32_0 : i32, i32
  }
  func.func @transform_4(%arg0: i32) -> (i32, i32) {
    %c0_i32 = arith.constant 0 : i32
    %c0_i32_0 = arith.constant 0 : i32
    return %arg0, %c0_i32 : i32, i32
  }
}

</mosaic_0001>

<llo_original>
// kernel: tpu_custom_call.1
$region0: #{tpu_custom_call.1}
  #allocation0 [shape = 'u32[]', space=smem, size = 0x4, offset = 0x4, fixed_abs, tag = 'smem constant byte address 0x4 - core index']
  #allocation1 [shape = 'u32[144,128]{1,0:T(1,128)}', space=vmem, size = 0x12000, scoped, tag = 'internal scratch']
  %s0 = inlined_call_operand.hbm [shape: bf16[16,128], index: 0, kind: input, shape index: {}]
  %s1 = inlined_call_operand.hbm [shape: bf16[128,128], index: 1, kind: input, shape index: {}]
  %s2 = inlined_call_operand.hbm [shape: bf16[128,128], index: 2, kind: input, shape index: {}]
  %s3 = inlined_call_operand.hbm [shape: f32[1,128], index: 3, kind: input, shape index: {}]
  %s4 = inlined_call_operand.hbm [shape: f32[16,128], index: 4, kind: output, shape index: {}]
  %s5 = sld [smem:[#allocation0]]
  $region42: #{tpu_custom_call.1} parent=0
    _
  %s7 = ssub.s32 1, %s5
  %s8 = scalar_select 0, %s7, %s5
  $region1: #{tpu_custom_call.1} parent=0
    #allocation2 [shape = 'u8[4096]{0}', space=vmem, size = 0x1000, scoped, tag = 'input window, operand 0, single buffered']
    #allocation3 [shape = 's32[1]{0}', space=sflag, size = 0x4, scoped, tag = 'scoped memory for tpu_custom_call.1']
    #allocation4 [shape = 's32[1]{0}', space=sflag, size = 0x4, scoped, tag = 'scoped memory for tpu_custom_call.1']
    #allocation5 [shape = 'u8[32768]{0}', space=vmem, size = 0x8000, scoped, tag = 'input window, operand 1, single buffered']
    #allocation6 [shape = 's32[1]{0}', space=sflag, size = 0x4, scoped, tag = 'scoped memory for tpu_custom_call.1']
    #allocation7 [shape = 'u8[32768]{0}', space=vmem, size = 0x8000, scoped, tag = 'input window, operand 2, single buffered']
    #allocation8 [shape = 'u8[512]{0}', space=vmem, size = 0x400, scoped, tag = 'input window, operand 3, single buffered']
    #allocation9 [shape = 's32[1]{0}', space=sflag, size = 0x4, scoped, tag = 'scoped memory for tpu_custom_call.1']
    #allocation10 [shape = 'u8[8192]{0}', space=vmem, size = 0x2000, scoped, tag = 'output window, operand 0, single buffered']
    %9 = vsyncpa [#allocation3], 0
    %10 = vsyncpa [#allocation6], 0
    %11 = vsyncpa [#allocation9], 0
    %12 = vsyncpa [#allocation4], 0
    // Predicated region
    $region2: #{tpu_custom_call.1} parent=1 // pred_check
      _
    $region3: #{tpu_custom_call.1} parent=1 // pred_check_branch
      %14 = sbr.rel (0) target = $region5
    $region4: #{tpu_custom_call.1} parent=1 // pred_region
      %s16 = ssub.s32 128, 128
      %17 = vsyncadd [#allocation3], %s16
      %s18 = sshll.u32 [#allocation2], 4
      %s19 = int_to_ptr.vmem [resolvable:$true] %s18
      %24 = dma.hbm_to_vmem [thread:$0]  %s0, 128, %s19, [#allocation3], 64, 64, 4
    $region5: #{tpu_custom_call.1} parent=1 // pred_fallthru
      _
    // Predicated region
    $region6: #{tpu_custom_call.1} parent=1 // pred_check
      _
    $region7: #{tpu_custom_call.1} parent=1 // pred_check_branch
      %26 = sbr.rel (0) target = $region9
    $region8: #{tpu_custom_call.1} parent=1 // pred_region
      %s28 = ssub.s32 1024, 1024
      %29 = vsyncadd [#allocation6], %s28
      %s30 = sshll.u32 [#allocation5], 4
      %s31 = int_to_ptr.vmem [resolvable:$true] %s30
      %36 = dma.hbm_to_vmem [thread:$0]  %s1, 1024, %s31, [#allocation6], 64, 64, 4
    $region9: #{tpu_custom_call.1} parent=1 // pred_fallthru
      _
    // Predicated region
    $region10: #{tpu_custom_call.1} parent=1 // pred_check
      _
    $region11: #{tpu_custom_call.1} parent=1 // pred_check_branch
      %38 = sbr.rel (0) target = $region13
    $region12: #{tpu_custom_call.1} parent=1 // pred_region
      %s40 = ssub.s32 1024, 1024
      %41 = vsyncadd [#allocation6], %s40
      %s42 = sshll.u32 [#allocation7], 4
      %s43 = int_to_ptr.vmem [resolvable:$true] %s42
      %48 = dma.hbm_to_vmem [thread:$0]  %s2, 1024, %s43, [#allocation6], 64, 64, 4
    $region13: #{tpu_custom_call.1} parent=1 // pred_fallthru
      _
    // Predicated region
    $region14: #{tpu_custom_call.1} parent=1 // pred_check
      _
    $region15: #{tpu_custom_call.1} parent=1 // pred_check_branch
      %50 = sbr.rel (0) target = $region17
    $region16: #{tpu_custom_call.1} parent=1 // pred_region
      %s52 = ssub.s32 16, 16
      %53 = vsyncadd [#allocation9], %s52
      %s55 = sshll.u32 [#allocation8], 4
      %s56 = int_to_ptr.vmem [resolvable:$true] %s55
      %58 = dma.hbm_to_vmem [thread:$0]  %s3, 16, %s56, [#allocation9]
    $region17: #{tpu_custom_call.1} parent=1 // pred_fallthru
      _
    // Predicated region
    $region18: #{tpu_custom_call.1} parent=1 // pred_check
      _
    $region19: #{tpu_custom_call.1} parent=1 // pred_check_branch
      %60 = sbr.rel (0) target = $region21
    $region20: #{tpu_custom_call.1} parent=1 // pred_region
      %61 = dma.done [#allocation3], 128
    $region21: #{tpu_custom_call.1} parent=1 // pred_fallthru
      _
    // Predicated region
    $region22: #{tpu_custom_call.1} parent=1 // pred_check
      _
    $region23: #{tpu_custom_call.1} parent=1 // pred_check_branch
      %63 = sbr.rel (0) target = $region25
    $region24: #{tpu_custom_call.1} parent=1 // pred_region
      %64 = dma.done [#allocation6], 1024
    $region25: #{tpu_custom_call.1} parent=1 // pred_fallthru
      _
    // Predicated region
    $region26: #{tpu_custom_call.1} parent=1 // pred_check
      _
    $region27: #{tpu_custom_call.1} parent=1 // pred_check_branch
      %66 = sbr.rel (0) target = $region29
    $region28: #{tpu_custom_call.1} parent=1 // pred_region
      %67 = dma.done [#allocation6], 1024
    $region29: #{tpu_custom_call.1} parent=1 // pred_fallthru
      _
    // Predicated region
    $region30: #{tpu_custom_call.1} parent=1 // pred_check
      _
    $region31: #{tpu_custom_call.1} parent=1 // pred_check_branch
      %69 = sbr.rel (0) target = $region33
    $region32: #{tpu_custom_call.1} parent=1 // pred_region
      %70 = dma.done [#allocation9], 16
    $region33: #{tpu_custom_call.1} parent=1 // pred_fallthru
      _
    %v72 = vld [vmem:[#allocation2] sm:$0xf]
    %v73 = vld [vmem:[#allocation2 + $0x4] sm:$0xf]
    %v74 = vld [vmem:[#allocation5] sm:$0xf]
    %v75 = vld [vmem:[#allocation5 + $0x4] sm:$0xf]
    %v76 = vld [vmem:[#allocation5 + $0x8] sm:$0xf]
    %v77 = vld [vmem:[#allocation5 + $0xc] sm:$0xf]
    %v78 = vld [vmem:[#allocation5 + $0x10] sm:$0xf]
    %v79 = vld [vmem:[#allocation5 + $0x14] sm:$0xf]
    %v80 = vld [vmem:[#allocation5 + $0x18] sm:$0xf]
    %v81 = vld [vmem:[#allocation5 + $0x1c] sm:$0xf]
    %v82 = vld [vmem:[#allocation5 + $0x20] sm:$0xf]
    %v83 = vld [vmem:[#allocation5 + $0x24] sm:$0xf]
    %v84 = vld [vmem:[#allocation5 + $0x28] sm:$0xf]
    %v85 = vld [vmem:[#allocation5 + $0x2c] sm:$0xf]
    %v86 = vld [vmem:[#allocation5 + $0x30] sm:$0xf]
    %v87 = vld [vmem:[#allocation5 + $0x34] sm:$0xf]
    %v88 = vld [vmem:[#allocation5 + $0x38] sm:$0xf]
    %v89 = vld [vmem:[#allocation5 + $0x3c] sm:$0xf]
    %v92 = vunpack.c.l.b16 %v72
    %v93 = vunpack.c.l.b16 %v73
    %v94 = vpack.c.b16 %v93, %v92
    %v112 = vunpack.c.l.b16 %v74
    %v113 = vunpack.c.l.b16 %v75
    %v114 = vunpack.c.l.b16 %v76
    %v115 = vunpack.c.l.b16 %v77
    %v116 = vunpack.c.l.b16 %v78
    %v117 = vunpack.c.l.b16 %v79
    %v118 = vunpack.c.l.b16 %v80
    %v119 = vunpack.c.l.b16 %v81
    %v120 = vunpack.c.l.b16 %v82
    %v121 = vunpack.c.l.b16 %v83
    %v122 = vunpack.c.l.b16 %v84
    %v123 = vunpack.c.l.b16 %v85
    %v124 = vunpack.c.l.b16 %v86
    %v125 = vunpack.c.l.b16 %v87
    %v126 = vunpack.c.l.b16 %v88
    %v127 = vunpack.c.l.b16 %v89
    %v128 = vpack.c.b16 %v113, %v112
    %v129 = vpack.c.b16 %v115, %v114
    %v130 = vpack.c.b16 %v117, %v116
    %v131 = vpack.c.b16 %v119, %v118
    %v132 = vpack.c.b16 %v121, %v120
    %v133 = vpack.c.b16 %v123, %v122
    %v134 = vpack.c.b16 %v125, %v124
    %v135 = vpack.c.b16 %v127, %v126
    %144 = vmatprep.subr.bf16.mxu0 0
    %145 = vmatpush1.bf16.msra.mxu0 %v128
    %146 = vmatprep.subr.bf16.mxu0 0
    %147 = vmatpush1.bf16.msra.mxu0 %v129
    %148 = vmatprep.subr.bf16.mxu0 0
    %149 = vmatpush1.bf16.msra.mxu0 %v130
    %150 = vmatprep.subr.bf16.mxu0 0
    %151 = vmatpush1.bf16.msra.mxu0 %v131
    %152 = vmatprep.subr.bf16.mxu0 0
    %153 = vmatpush1.bf16.msra.mxu0 %v132
    %154 = vmatprep.subr.bf16.mxu0 0
    %155 = vmatpush1.bf16.msra.mxu0 %v133
    %156 = vmatprep.subr.bf16.mxu0 0
    %157 = vmatpush1.bf16.msra.mxu0 %v134
    %158 = vmatprep.subr.bf16.mxu0 0
    %159 = vmatpush1.bf16.msra.mxu0 %v135
    %160 = vmatprep.subr.bf16.mxu0 0
    %161 = vmatpush1.bf16.msra.mxu0 0
    %162 = vmatprep.subr.bf16.mxu0 0
    %163 = vmatpush1.bf16.msra.mxu0 0
    %164 = vmatprep.subr.bf16.mxu0 0
    %165 = vmatpush1.bf16.msra.mxu0 0
    %166 = vmatprep.subr.bf16.mxu0 0
    %167 = vmatpush1.bf16.msra.mxu0 0
    %168 = vmatprep.subr.bf16.mxu0 0
    %169 = vmatpush1.bf16.msra.mxu0 0
    %170 = vmatprep.subr.bf16.mxu0 0
    %171 = vmatpush1.bf16.msra.mxu0 0
    %172 = vmatprep.subr.bf16.mxu0 0
    %173 = vmatpush1.bf16.msra.mxu0 0
    %174 = vmatprep.subr.bf16.mxu0 0
    %175 = vmatpush1.bf16.msra.mxu0 0
    %176 = vmatprep.mubr.bf16.mxu0 0
    %177 = vmatmul.mubr.bf16.gmra.mrb[0].mxu0 %v94
    %v178 = vpop.f32.mrb[0].mxu0
    %v179 = vadd.f32 0.0, %v178
    %v180 = vpop.f32.mrb[0].mxu0
    %v181 = vpop.f32.mrb[0].mxu0
    %v182 = vadd.f32 0.0, %v181
    %v183 = vpop.f32.mrb[0].mxu0
    %184 = vdwg.mxu0
    %v185 = vmul.bf16 %v72, %v72
    %v186 = vmul.bf16 %v73, %v73
    %v187 = vld [vmem:[#allocation7] sm:$0xf]
    %v188 = vld [vmem:[#allocation7 + $0x4] sm:$0xf]
    %v189 = vld [vmem:[#allocation7 + $0x8] sm:$0xf]
    %v190 = vld [vmem:[#allocation7 + $0xc] sm:$0xf]
    %v191 = vld [vmem:[#allocation7 + $0x10] sm:$0xf]
    %v192 = vld [vmem:[#allocation7 + $0x14] sm:$0xf]
    %v193 = vld [vmem:[#allocation7 + $0x18] sm:$0xf]
    %v194 = vld [vmem:[#allocation7 + $0x1c] sm:$0xf]
    %v195 = vld [vmem:[#allocation7 + $0x20] sm:$0xf]
    %v196 = vld [vmem:[#allocation7 + $0x24] sm:$0xf]
    %v197 = vld [vmem:[#allocation7 + $0x28] sm:$0xf]
    %v198 = vld [vmem:[#allocation7 + $0x2c] sm:$0xf]
    %v199 = vld [vmem:[#allocation7 + $0x30] sm:$0xf]
    %v200 = vld [vmem:[#allocation7 + $0x34] sm:$0xf]
    %v201 = vld [vmem:[#allocation7 + $0x38] sm:$0xf]
    %v202 = vld [vmem:[#allocation7 + $0x3c] sm:$0xf]
    %v205 = vunpack.c.l.b16 %v185
    %v206 = vunpack.c.l.b16 %v186
    %v207 = vpack.c.b16 %v206, %v205
    %v225 = vunpack.c.l.b16 %v187
    %v226 = vunpack.c.l.b16 %v188
    %v227 = vunpack.c.l.b16 %v189
    %v228 = vunpack.c.l.b16 %v190
    %v229 = vunpack.c.l.b16 %v191
    %v230 = vunpack.c.l.b16 %v192
    %v231 = vunpack.c.l.b16 %v193
    %v232 = vunpack.c.l.b16 %v194
    %v233 = vunpack.c.l.b16 %v195
    %v234 = vunpack.c.l.b16 %v196
    %v235 = vunpack.c.l.b16 %v197
    %v236 = vunpack.c.l.b16 %v198
    %v237 = vunpack.c.l.b16 %v199
    %v238 = vunpack.c.l.b16 %v200
    %v239 = vunpack.c.l.b16 %v201
    %v240 = vunpack.c.l.b16 %v202
    %v241 = vpack.c.b16 %v226, %v225
    %v242 = vpack.c.b16 %v228, %v227
    %v243 = vpack.c.b16 %v230, %v229
    %v244 = vpack.c.b16 %v232, %v231
    %v245 = vpack.c.b16 %v234, %v233
    %v246 = vpack.c.b16 %v236, %v235
    %v247 = vpack.c.b16 %v238, %v237
    %v248 = vpack.c.b16 %v240, %v239
    %257 = vmatprep.subr.bf16.mxu0 0
    %258 = vmatpush1.bf16.msra.mxu0 %v241
    %259 = vmatprep.subr.bf16.mxu0 0
    %260 = vmatpush1.bf16.msra.mxu0 %v242
    %261 = vmatprep.subr.bf16.mxu0 0
    %262 = vmatpush1.bf16.msra.mxu0 %v243
    %263 = vmatprep.subr.bf16.mxu0 0
    %264 = vmatpush1.bf16.msra.mxu0 %v244
    %265 = vmatprep.subr.bf16.mxu0 0
    %266 = vmatpush1.bf16.msra.mxu0 %v245
    %267 = vmatprep.subr.bf16.mxu0 0
    %268 = vmatpush1.bf16.msra.mxu0 %v246
    %269 = vmatprep.subr.bf16.mxu0 0
    %270 = vmatpush1.bf16.msra.mxu0 %v247
    %271 = vmatprep.subr.bf16.mxu0 0
    %272 = vmatpush1.bf16.msra.mxu0 %v248
    %273 = vmatprep.subr.bf16.mxu0 0
    %274 = vmatpush1.bf16.msra.mxu0 0
    %275 = vmatprep.subr.bf16.mxu0 0
    %276 = vmatpush1.bf16.msra.mxu0 0
    %277 = vmatprep.subr.bf16.mxu0 0
    %278 = vmatpush1.bf16.msra.mxu0 0
    %279 = vmatprep.subr.bf16.mxu0 0
    %280 = vmatpush1.bf16.msra.mxu0 0
    %281 = vmatprep.subr.bf16.mxu0 0
    %282 = vmatpush1.bf16.msra.mxu0 0
    %283 = vmatprep.subr.bf16.mxu0 0
    %284 = vmatpush1.bf16.msra.mxu0 0
    %285 = vmatprep.subr.bf16.mxu0 0
    %286 = vmatpush1.bf16.msra.mxu0 0
    %287 = vmatprep.subr.bf16.mxu0 0
    %288 = vmatpush1.bf16.msra.mxu0 0
    %289 = vmatprep.mubr.bf16.mxu0 0
    %290 = vmatmul.mubr.bf16.gmra.mrb[0].mxu0 %v207
    %v291 = vpop.f32.mrb[0].mxu0
    %v292 = vadd.f32 1.0, %v291
    %v293 = vpop.f32.mrb[0].mxu0
    %v294 = vpop.f32.mrb[0].mxu0
    %v295 = vadd.f32 1.0, %v294
    %v296 = vpop.f32.mrb[0].mxu0
    %297 = vdwg.mxu0
    %v298 = vrsqrt.pop %v292
    %v299 = vrsqrt.pop %v295
    %v300 = vmul.f32 %v298, %v179
    %v301 = vmul.f32 %v299, %v182
    %v302 = vld [vmem:[#allocation8] sm:$0x1]
    %v304 = vlaneseq
    %v305 = vshrl.u32 %v304, 7
    %v306 = vsub.s32 0, %v305
    %v307 = vrot.slane %v302, %v306
    %v309 = vadd.f32 %v300, %v307
    %v310 = vadd.f32 %v301, %v307
    %311 = vst [vmem:[#allocation10] sm:$0xff] %v309
    %312 = vst [vmem:[#allocation10 + $0x8] sm:$0xff] %v310
    // Predicated region
    $region34: #{tpu_custom_call.1} parent=1 // pred_check
      _
    $region35: #{tpu_custom_call.1} parent=1 // pred_check_branch
      %314 = sbr.rel (0) target = $region37
    $region36: #{tpu_custom_call.1} parent=1 // pred_region
      %s316 = ssub.s32 256, 256
      %317 = vsyncadd [#allocation4], %s316
      %s318 = sshll.u32 [#allocation10], 4
      %s319 = int_to_ptr.vmem [resolvable:$true] %s318
      %324 = dma.vmem_to_hbm [thread:$0]  %s319, 256, %s4, [#allocation4], 128, 128, 8
    $region37: #{tpu_custom_call.1} parent=1 // pred_fallthru
      _
    // Predicated region
    $region38: #{tpu_custom_call.1} parent=1 // pred_check
      _
    $region39: #{tpu_custom_call.1} parent=1 // pred_check_branch
      %326 = sbr.rel (0) target = $region41
    $region40: #{tpu_custom_call.1} parent=1 // pred_region
      %327 = dma.done [#allocation4], 256
    $region41: #{tpu_custom_call.1} parent=1 // pred_fallthru
      _
    %328 = vsyncpa [#allocation3], 1
    %329 = vsyncpa [#allocation6], 1
    %330 = vsyncpa [#allocation9], 1
    %331 = vsyncpa [#allocation4], 1

// kernel: tpu_custom_call.1
$region0: #{tpu_custom_call.1}
  #allocation0 [shape = 'u32[]', space=smem, size = 0x4, offset = 0x4, fixed_abs, tag = 'smem constant byte address 0x4 - core index']
  #allocation1 [shape = 'u32[144,128]{1,0:T(1,128)}', space=vmem, size = 0x12000, scoped, tag = 'internal scratch']
  %s0 = inlined_call_operand.hbm [shape: bf16[16,128], index: 0, kind: input, shape index: {}]
  %s1 = inlined_call_operand.hbm [shape: bf16[128,128], index: 1, kind: input, shape index: {}]
  %s2 = inlined_call_operand.hbm [shape: bf16[128,128], index: 2, kind: input, shape index: {}]
  %s3 = inlined_call_operand.hbm [shape: f32[1,128], index: 3, kind: input, shape index: {}]
  %s4 = inlined_call_operand.hbm [shape: f32[16,128], index: 4, kind: output, shape index: {}]
  %s5 = sld [smem:[#allocation0]]
  $region42: #{tpu_custom_call.1} parent=0
    _
  %s7 = ssub.s32 1, %s5
  %s8 = scalar_select 0, %s7, %s5
  $region1: #{tpu_custom_call.1} parent=0
    #allocation2 [shape = 'u8[4096]{0}', space=vmem, size = 0x1000, scoped, tag = 'input window, operand 0, single buffered']
    #allocation3 [shape = 's32[1]{0}', space=sflag, size = 0x4, scoped, tag = 'scoped memory for tpu_custom_call.1']
    #allocation4 [shape = 's32[1]{0}', space=sflag, size = 0x4, scoped, tag = 'scoped memory for tpu_custom_call.1']
    #allocation5 [shape = 'u8[32768]{0}', space=vmem, size = 0x8000, scoped, tag = 'input window, operand 1, single buffered']
    #allocation6 [shape = 's32[1]{0}', space=sflag, size = 0x4, scoped, tag = 'scoped memory for tpu_custom_call.1']
    #allocation7 [shape = 'u8[32768]{0}', space=vmem, size = 0x8000, scoped, tag = 'input window, operand 2, single buffered']
    #allocation8 [shape = 'u8[512]{0}', space=vmem, size = 0x400, scoped, tag = 'input window, operand 3, single buffered']
    #allocation9 [shape = 's32[1]{0}', space=sflag, size = 0x4, scoped, tag = 'scoped memory for tpu_custom_call.1']
    #allocation10 [shape = 'u8[8192]{0}', space=vmem, size = 0x2000, scoped, tag = 'output window, operand 0, single buffered']
    %9 = vsyncpa [#allocation3], 0
    %10 = vsyncpa [#allocation6], 0
    %11 = vsyncpa [#allocation9], 0
    %12 = vsyncpa [#allocation4], 0
    // Predicated region
    $region2: #{tpu_custom_call.1} parent=1 // pred_check
      _
    $region3: #{tpu_custom_call.1} parent=1 // pred_check_branch
      %14 = sbr.rel (0) target = $region5
    $region4: #{tpu_custom_call.1} parent=1 // pred_region
      %s16 = ssub.s32 128, 128
      %17 = vsyncadd [#allocation3], %s16
      %s18 = sshll.u32 [#allocation2], 4
      %s19 = int_to_ptr.vmem [resolvable:$true] %s18
      %24 = dma.hbm_to_vmem [thread:$0]  %s0, 128, %s19, [#allocation3], 64, 64, 4
    $region5: #{tpu_custom_call.1} parent=1 // pred_fallthru
      _
    // Predicated region
    $region6: #{tpu_custom_call.1} parent=1 // pred_check
      _
    $region7: #{tpu_custom_call.1} parent=1 // pred_check_branch
      %26 = sbr.rel (0) target = $region9
    $region8: #{tpu_custom_call.1} parent=1 // pred_region
      %s28 = ssub.s32 1024, 1024
      %29 = vsyncadd [#allocation6], %s28
      %s30 = sshll.u32 [#allocation5], 4
      %s31 = int_to_ptr.vmem [resolvable:$true] %s30
      %36 = dma.hbm_to_vmem [thread:$0]  %s1, 1024, %s31, [#allocation6], 64, 64, 4
    $region9: #{tpu_custom_call.1} parent=1 // pred_fallthru
      _
    // Predicated region
    $region10: #{tpu_custom_call.1} parent=1 // pred_check
      _
    $region11: #{tpu_custom_call.1} parent=1 // pred_check_branch
      %38 = sbr.rel (0) target = $region13
    $region12: #{tpu_custom_call.1} parent=1 // pred_region
      %s40 = ssub.s32 1024, 1024
      %41 = vsyncadd [#allocation6], %s40
      %s42 = sshll.u32 [#allocation7], 4
      %s43 = int_to_ptr.vmem [resolvable:$true] %s42
      %48 = dma.hbm_to_vmem [thread:$0]  %s2, 1024, %s43, [#allocation6], 64, 64, 4
    $region13: #{tpu_custom_call.1} parent=1 // pred_fallthru
      _
    // Predicated region
    $region14: #{tpu_custom_call.1} parent=1 // pred_check
      _
    $region15: #{tpu_custom_call.1} parent=1 // pred_check_branch
      %50 = sbr.rel (0) target = $region17
    $region16: #{tpu_custom_call.1} parent=1 // pred_region
      %s52 = ssub.s32 16, 16
      %53 = vsyncadd [#allocation9], %s52
      %s55 = sshll.u32 [#allocation8], 4
      %s56 = int_to_ptr.vmem [resolvable:$true] %s55
      %58 = dma.hbm_to_vmem [thread:$0]  %s3, 16, %s56, [#allocation9]
    $region17: #{tpu_custom_call.1} parent=1 // pred_fallthru
      _
    // Predicated region
    $region18: #{tpu_custom_call.1} parent=1 // pred_check
      _
    $region19: #{tpu_custom_call.1} parent=1 // pred_check_branch
      %60 = sbr.rel (0) target = $region21
    $region20: #{tpu_custom_call.1} parent=1 // pred_region
      %61 = dma.done [#allocation3], 128
    $region21: #{tpu_custom_call.1} parent=1 // pred_fallthru
      _
    // Predicated region
    $region22: #{tpu_custom_call.1} parent=1 // pred_check
      _
    $region23: #{tpu_custom_call.1} parent=1 // pred_check_branch
      %63 = sbr.rel (0) target = $region25
    $region24: #{tpu_custom_call.1} parent=1 // pred_region
      %64 = dma.done [#allocation6], 1024
    $region25: #{tpu_custom_call.1} parent=1 // pred_fallthru
      _
    // Predicated region
    $region26: #{tpu_custom_call.1} parent=1 // pred_check
      _
    $region27: #{tpu_custom_call.1} parent=1 // pred_check_branch
      %66 = sbr.rel (0) target = $region29
    $region28: #{tpu_custom_call.1} parent=1 // pred_region
      %67 = dma.done [#allocation6], 1024
    $region29: #{tpu_custom_call.1} parent=1 // pred_fallthru
      _
    // Predicated region
    $region30: #{tpu_custom_call.1} parent=1 // pred_check
      _
    $region31: #{tpu_custom_call.1} parent=1 // pred_check_branch
      %69 = sbr.rel (0) target = $region33
    $region32: #{tpu_custom_call.1} parent=1 // pred_region
      %70 = dma.done [#allocation9], 16
    $region33: #{tpu_custom_call.1} parent=1 // pred_fallthru
      _
    %v72 = vld [vmem:[#allocation2] sm:$0xf]
    %v73 = vld [vmem:[#allocation2 + $0x4] sm:$0xf]
    %v74 = vld [vmem:[#allocation5] sm:$0xf]
    %v75 = vld [vmem:[#allocation5 + $0x4] sm:$0xf]
    %v76 = vld [vmem:[#allocation5 + $0x8] sm:$0xf]
    %v77 = vld [vmem:[#allocation5 + $0xc] sm:$0xf]
    %v78 = vld [vmem:[#allocation5 + $0x10] sm:$0xf]
    %v79 = vld [vmem:[#allocation5 + $0x14] sm:$0xf]
    %v80 = vld [vmem:[#allocation5 + $0x18] sm:$0xf]
    %v81 = vld [vmem:[#allocation5 + $0x1c] sm:$0xf]
    %v82 = vld [vmem:[#allocation5 + $0x20] sm:$0xf]
    %v83 = vld [vmem:[#allocation5 + $0x24] sm:$0xf]
    %v84 = vld [vmem:[#allocation5 + $0x28] sm:$0xf]
    %v85 = vld [vmem:[#allocation5 + $0x2c] sm:$0xf]
    %v86 = vld [vmem:[#allocation5 + $0x30] sm:$0xf]
    %v87 = vld [vmem:[#allocation5 + $0x34] sm:$0xf]
    %v88 = vld [vmem:[#allocation5 + $0x38] sm:$0xf]
    %v89 = vld [vmem:[#allocation5 + $0x3c] sm:$0xf]
    %v92 = vunpack.c.l.b16 %v72
    %v93 = vunpack.c.l.b16 %v73
    %v94 = vpack.c.b16 %v93, %v92
    %v112 = vunpack.c.l.b16 %v74
    %v113 = vunpack.c.l.b16 %v75
    %v114 = vunpack.c.l.b16 %v76
    %v115 = vunpack.c.l.b16 %v77
    %v116 = vunpack.c.l.b16 %v78
    %v117 = vunpack.c.l.b16 %v79
    %v118 = vunpack.c.l.b16 %v80
    %v119 = vunpack.c.l.b16 %v81
    %v120 = vunpack.c.l.b16 %v82
    %v121 = vunpack.c.l.b16 %v83
    %v122 = vunpack.c.l.b16 %v84
    %v123 = vunpack.c.l.b16 %v85
    %v124 = vunpack.c.l.b16 %v86
    %v125 = vunpack.c.l.b16 %v87
    %v126 = vunpack.c.l.b16 %v88
    %v127 = vunpack.c.l.b16 %v89
    %v128 = vpack.c.b16 %v113, %v112
    %v129 = vpack.c.b16 %v115, %v114
    %v130 = vpack.c.b16 %v117, %v116
    %v131 = vpack.c.b16 %v119, %v118
    %v132 = vpack.c.b16 %v121, %v120
    %v133 = vpack.c.b16 %v123, %v122
    %v134 = vpack.c.b16 %v125, %v124
    %v135 = vpack.c.b16 %v127, %v126
    %144 = vmatprep.subr.bf16.mxu0 0
    %145 = vmatpush1.bf16.msra.mxu0 %v128
    %146 = vmatprep.subr.bf16.mxu0 0
    %147 = vmatpush1.bf16.msra.mxu0 %v129
    %148 = vmatprep.subr.bf16.mxu0 0
    %149 = vmatpush1.bf16.msra.mxu0 %v130
    %150 = vmatprep.subr.bf16.mxu0 0
    %151 = vmatpush1.bf16.msra.mxu0 %v131
    %152 = vmatprep.subr.bf16.mxu0 0
    %153 = vmatpush1.bf16.msra.mxu0 %v132
    %154 = vmatprep.subr.bf16.mxu0 0
    %155 = vmatpush1.bf16.msra.mxu0 %v133
    %156 = vmatprep.subr.bf16.mxu0 0
    %157 = vmatpush1.bf16.msra.mxu0 %v134
    %158 = vmatprep.subr.bf16.mxu0 0
    %159 = vmatpush1.bf16.msra.mxu0 %v135
    %160 = vmatprep.subr.bf16.mxu0 0
    %161 = vmatpush1.bf16.msra.mxu0 0
    %162 = vmatprep.subr.bf16.mxu0 0
    %163 = vmatpush1.bf16.msra.mxu0 0
    %164 = vmatprep.subr.bf16.mxu0 0
    %165 = vmatpush1.bf16.msra.mxu0 0
    %166 = vmatprep.subr.bf16.mxu0 0
    %167 = vmatpush1.bf16.msra.mxu0 0
    %168 = vmatprep.subr.bf16.mxu0 0
    %169 = vmatpush1.bf16.msra.mxu0 0
    %170 = vmatprep.subr.bf16.mxu0 0
    %171 = vmatpush1.bf16.msra.mxu0 0
    %172 = vmatprep.subr.bf16.mxu0 0
    %173 = vmatpush1.bf16.msra.mxu0 0
    %174 = vmatprep.subr.bf16.mxu0 0
    %175 = vmatpush1.bf16.msra.mxu0 0
    %176 = vmatprep.mubr.bf16.mxu0 0
    %177 = vmatmul.mubr.bf16.gmra.mrb[0].mxu0 %v94
    %v178 = vpop.f32.mrb[0].mxu0
    %v179 = vadd.f32 0.0, %v178
    %v180 = vpop.f32.mrb[0].mxu0
    %v181 = vpop.f32.mrb[0].mxu0
    %v182 = vadd.f32 0.0, %v181
    %v183 = vpop.f32.mrb[0].mxu0
    %184 = vdwg.mxu0
    %v185 = vmul.bf16 %v72, %v72
    %v186 = vmul.bf16 %v73, %v73
    %v187 = vld [vmem:[#allocation7] sm:$0xf]
    %v188 = vld [vmem:[#allocation7 + $0x4] sm:$0xf]
    %v189 = vld [vmem:[#allocation7 + $0x8] sm:$0xf]
    %v190 = vld [vmem:[#allocation7 + $0xc] sm:$0xf]
    %v191 = vld [vmem:[#allocation7 + $0x10] sm:$0xf]
    %v192 = vld [vmem:[#allocation7 + $0x14] sm:$0xf]
    %v193 = vld [vmem:[#allocation7 + $0x18] sm:$0xf]
    %v194 = vld [vmem:[#allocation7 + $0x1c] sm:$0xf]
    %v195 = vld [vmem:[#allocation7 + $0x20] sm:$0xf]
    %v196 = vld [vmem:[#allocation7 + $0x24] sm:$0xf]
    %v197 = vld [vmem:[#allocation7 + $0x28] sm:$0xf]
    %v198 = vld [vmem:[#allocation7 + $0x2c] sm:$0xf]
    %v199 = vld [vmem:[#allocation7 + $0x30] sm:$0xf]
    %v200 = vld [vmem:[#allocation7 + $0x34] sm:$0xf]
    %v201 = vld [vmem:[#allocation7 + $0x38] sm:$0xf]
    %v202 = vld [vmem:[#allocation7 + $0x3c] sm:$0xf]
    %v205 = vunpack.c.l.b16 %v185
    %v206 = vunpack.c.l.b16 %v186
    %v207 = vpack.c.b16 %v206, %v205
    %v225 = vunpack.c.l.b16 %v187
    %v226 = vunpack.c.l.b16 %v188
    %v227 = vunpack.c.l.b16 %v189
    %v228 = vunpack.c.l.b16 %v190
    %v229 = vunpack.c.l.b16 %v191
    %v230 = vunpack.c.l.b16 %v192
    %v231 = vunpack.c.l.b16 %v193
    %v232 = vunpack.c.l.b16 %v194
    %v233 = vunpack.c.l.b16 %v195
    %v234 = vunpack.c.l.b16 %v196
    %v235 = vunpack.c.l.b16 %v197
    %v236 = vunpack.c.l.b16 %v198
    %v237 = vunpack.c.l.b16 %v199
    %v238 = vunpack.c.l.b16 %v200
    %v239 = vunpack.c.l.b16 %v201
    %v240 = vunpack.c.l.b16 %v202
    %v241 = vpack.c.b16 %v226, %v225
    %v242 = vpack.c.b16 %v228, %v227
    %v243 = vpack.c.b16 %v230, %v229
    %v244 = vpack.c.b16 %v232, %v231
    %v245 = vpack.c.b16 %v234, %v233
    %v246 = vpack.c.b16 %v236, %v235
    %v247 = vpack.c.b16 %v238, %v237
    %v248 = vpack.c.b16 %v240, %v239
    %257 = vmatprep.subr.bf16.mxu0 0
    %258 = vmatpush1.bf16.msra.mxu0 %v241
    %259 = vmatprep.subr.bf16.mxu0 0
    %260 = vmatpush1.bf16.msra.mxu0 %v242
    %261 = vmatprep.subr.bf16.mxu0 0
    %262 = vmatpush1.bf16.msra.mxu0 %v243
    %263 = vmatprep.subr.bf16.mxu0 0
    %264 = vmatpush1.bf16.msra.mxu0 %v244
    %265 = vmatprep.subr.bf16.mxu0 0
    %266 = vmatpush1.bf16.msra.mxu0 %v245
    %267 = vmatprep.subr.bf16.mxu0 0
    %268 = vmatpush1.bf16.msra.mxu0 %v246
    %269 = vmatprep.subr.bf16.mxu0 0
    %270 = vmatpush1.bf16.msra.mxu0 %v247
    %271 = vmatprep.subr.bf16.mxu0 0
    %272 = vmatpush1.bf16.msra.mxu0 %v248
    %273 = vmatprep.subr.bf16.mxu0 0
    %274 = vmatpush1.bf16.msra.mxu0 0
    %275 = vmatprep.subr.bf16.mxu0 0
    %276 = vmatpush1.bf16.msra.mxu0 0
    %277 = vmatprep.subr.bf16.mxu0 0
    %278 = vmatpush1.bf16.msra.mxu0 0
    %279 = vmatprep.subr.bf16.mxu0 0
    %280 = vmatpush1.bf16.msra.mxu0 0
    %281 = vmatprep.subr.bf16.mxu0 0
    %282 = vmatpush1.bf16.msra.mxu0 0
    %283 = vmatprep.subr.bf16.mxu0 0
    %284 = vmatpush1.bf16.msra.mxu0 0
    %285 = vmatprep.subr.bf16.mxu0 0
    %286 = vmatpush1.bf16.msra.mxu0 0
    %287 = vmatprep.subr.bf16.mxu0 0
    %288 = vmatpush1.bf16.msra.mxu0 0
    %289 = vmatprep.mubr.bf16.mxu0 0
    %290 = vmatmul.mubr.bf16.gmra.mrb[0].mxu0 %v207
    %v291 = vpop.f32.mrb[0].mxu0
    %v292 = vadd.f32 1.0, %v291
    %v293 = vpop.f32.mrb[0].mxu0
    %v294 = vpop.f32.mrb[0].mxu0
    %v295 = vadd.f32 1.0, %v294
    %v296 = vpop.f32.mrb[0].mxu0
    %297 = vdwg.mxu0
    %v298 = vrsqrt.pop %v292
    %v299 = vrsqrt.pop %v295
    %v300 = vmul.f32 %v298, %v179
    %v301 = vmul.f32 %v299, %v182
    %v302 = vld [vmem:[#allocation8] sm:$0x1]
    %v304 = vlaneseq
    %v305 = vshrl.u32 %v304, 7
    %v306 = vsub.s32 0, %v305
    %v307 = vrot.slane %v302, %v306
    %v309 = vadd.f32 %v300, %v307
    %v310 = vadd.f32 %v301, %v307
    %311 = vst [vmem:[#allocation10] sm:$0xff] %v309
    %312 = vst [vmem:[#allocation10 + $0x8] sm:$0xff] %v310
    // Predicated region
    $region34: #{tpu_custom_call.1} parent=1 // pred_check
      _
    $region35: #{tpu_custom_call.1} parent=1 // pred_check_branch
      %314 = sbr.rel (0) target = $region37
    $region36: #{tpu_custom_call.1} parent=1 // pred_region
      %s316 = ssub.s32 256, 256
      %317 = vsyncadd [#allocation4], %s316
      %s318 = sshll.u32 [#allocation10], 4
      %s319 = int_to_ptr.vmem [resolvable:$true] %s318
      %324 = dma.vmem_to_hbm [thread:$0]  %s319, 256, %s4, [#allocation4], 128, 128, 8
    $region37: #{tpu_custom_call.1} parent=1 // pred_fallthru
      _
    // Predicated region
    $region38: #{tpu_custom_call.1} parent=1 // pred_check
      _
    $region39: #{tpu_custom_call.1} parent=1 // pred_check_branch
      %326 = sbr.rel (0) target = $region41
    $region40: #{tpu_custom_call.1} parent=1 // pred_region
      %327 = dma.done [#allocation4], 256
    $region41: #{tpu_custom_call.1} parent=1 // pred_fallthru
      _
    %328 = vsyncpa [#allocation3], 1
    %329 = vsyncpa [#allocation6], 1
    %330 = vsyncpa [#allocation9], 1
    %331 = vsyncpa [#allocation4], 1

</llo_original>
